<compile_context>
chip_gen: v7x
topology: tpu7x:2x2x1
jax: 0.10.0
libtpu: 0.0.40
codegen_flags: <defaults>
</compile_context>

<pallas_src>
import jax
import jax.numpy as jnp
import numpy as np
from jax.experimental import pallas as pl
from jax.experimental.pallas import tpu as pltpu

# ---------------- model dimensions (small, synthetic) ----------------
VOCAB = 100          # number of tracks in the non-album-cover representer
VOCAB_PAD = 128      # table rows padded to a lane-friendly multiple (zero rows, never selected)
D_NON = 32           # non_album_covers_representor embedding dim
D_COVER = 64         # data_manager.album_covers_embs.shape[1]
D_HIDDEN = 300       # fixed by the module: Linear(D_COVER, 300)
D_HIDDEN_PAD = 384   # padded to a multiple of 128 lanes (exact: zero pad cols/rows, ReLU(0)=0)
D_ADAPT = 32         # adapter_emb_size
D_OUT = D_NON + D_ADAPT

B, S = 2, 8          # batch, sequence (small demo shapes)

# Row tile at scale.  2048 keeps the double-buffered ids (lane-padded to 128), cover and
# out tiles plus the f32 hidden intermediate around ~10 MiB, safe on v7x's 64 MiB VMEM;
# on 128 MiB v5e/v6e this could be raised to 4096-8192.
ROW_TILE = 2048


def _concat_album_cover_kernel(ids_ref, table_ref, cover_ref, w1_ref, b1_ref, w2_ref, b2_ref,
                               out_ref):
    tm = ids_ref.shape[0]
    vocab_pad = table_ref.shape[0]
    mm_dtype = w1_ref.dtype           # f32 or bf16 (weights pre-cast once in prepare_params)

    # ---- fused embedding lookup: exact f32 one-hot matmul on the MXU.  table_ref already
    # carries the embedding in output columns [0, D_NON) and zeros in [D_NON, D_OUT), so this
    # matmul lands directly in the concatenated output layout.  Kept f32 on purpose: bit-exact
    # lookup and only a small fraction of the kernel flops (if VOCAB ever grows, switch to a
    # scalar-prefetch / DMA row gather instead of one-hot). ----
    ids = ids_ref[...]                                                  # (tm, 1) int32
    iota = jax.lax.broadcasted_iota(jnp.int32, (tm, vocab_pad), 1)
    onehot = (ids == iota).astype(jnp.float32)                          # (tm, vocab_pad)
    out = jnp.dot(onehot, table_ref[...],
                  preferred_element_type=jnp.float32)                   # (tm, D_OUT)

    # ---- adaptor MLP: Linear(64 -> 384 padded) -> ReLU -> Linear(384 padded -> D_OUT).
    # w2/b2 are pre-padded with zeros in output columns [0, D_NON), so the second matmul
    # accumulates straight into the concatenated layout: no jnp.concatenate, one full store. ----
    h = jnp.dot(cover_ref[...].astype(mm_dtype), w1_ref[...],
                preferred_element_type=jnp.float32)
    h = jnp.maximum(h + b1_ref[...], 0.0)                               # bias + ReLU in f32
    out = out + jnp.dot(h.astype(mm_dtype), w2_ref[...],
                        preferred_element_type=jnp.float32)
    out = out + b2_ref[...]

    out_ref[...] = out.astype(out_ref.dtype)


def concat_album_cover_emb_forward(x, album_covers_embs, params, *,
                                   row_tile=ROW_TILE, single_buffer_consts=True):
    """x: int32 [B, S] track ids; album_covers_embs: f32 [B, S, D_COVER];
    params: output of prepare_params() (pre-padded, pre-cast)."""
    b, s = x.shape
    rows = b * s
    ids = x.reshape(rows, 1).astype(jnp.int32)                  # free reshape / no-op cast
    cover = album_covers_embs.reshape(rows, D_COVER).astype(jnp.float32)

    table = params["table_pad"]
    w1, b1 = params["w1_pad"], params["b1_pad"]
    w2, b2 = params["w2_pad"], params["b2_pad"]

    # --- row tiling: single block for small problems, ROW_TILE-row tiles at scale ---
    tm = rows if rows <= row_tile else row_tile
    tm = max(8, ((tm + 7) // 8) * 8)
    rows_padded = ((rows + tm - 1) // tm) * tm
    if rows_padded != rows:
        ids = jnp.pad(ids, ((0, rows_padded - rows), (0, 0)))
        cover = jnp.pad(cover, ((0, rows_padded - rows), (0, 0)))
    grid_len = rows_padded // tm

    # Constant-per-step blocks (table / weights / biases): when there is an actual multi-step
    # pipeline, skip their second pipeline buffer (pure VMEM waste; matters on v7x's 64 MiB).
    def const_spec(shape):
        if grid_len > 1 and single_buffer_consts:
            return pl.BlockSpec(shape, lambda i: (0, 0), pipeline_mode=pl.Buffered(1))
        return pl.BlockSpec(shape, lambda i: (0, 0))

    w_bytes = jnp.dtype(w1.dtype).itemsize
    cost = pl.CostEstimate(
        flops=2 * rows_padded * (VOCAB_PAD * D_OUT + D_COVER * D_HIDDEN_PAD
                                 + D_HIDDEN_PAD * D_OUT),
        transcendentals=0,
        bytes_accessed=(4 * rows_padded * (1 + D_COVER + D_OUT)
                        + 4 * VOCAB_PAD * D_OUT
                        + w_bytes * (D_COVER * D_HIDDEN_PAD + D_HIDDEN_PAD * D_OUT)
                        + 4 * (D_HIDDEN_PAD + D_OUT)),
    )

    out = pl.pallas_call(
        _concat_album_cover_kernel,
        out_shape=jax.ShapeDtypeStruct((rows_padded, D_OUT), jnp.float32),
        grid_spec=pltpu.PrefetchScalarGridSpec(
            num_scalar_prefetch=0,
            grid=(grid_len,),
            in_specs=[
                pl.BlockSpec((tm, 1), lambda i: (i, 0)),        # ids
                const_spec((VOCAB_PAD, D_OUT)),                 # emb table (pre-placed cols 0..31)
                pl.BlockSpec((tm, D_COVER), lambda i: (i, 0)),  # album cover embs
                const_spec((D_COVER, D_HIDDEN_PAD)),            # w1 (padded)
                const_spec((1, D_HIDDEN_PAD)),                  # b1 (padded)
                const_spec((D_HIDDEN_PAD, D_OUT)),              # w2 (pre-placed cols 32..63)
                const_spec((1, D_OUT)),                         # b2 (pre-placed cols 32..63)
            ],
            out_specs=pl.BlockSpec((tm, D_OUT), lambda i: (i, 0)),
        ),
        compiler_params=pltpu.CompilerParams(
            dimension_semantics=("parallel",),                  # no-op on 1-TC chips, splits on v7x
            vmem_limit_bytes=32 * 1024 * 1024,                  # explicit; ample for 2048-row tiles
        ),
        cost_estimate=cost,
    )(ids, table, cover, w1, b1, w2, b2)

    return out[:rows].reshape(b, s, D_OUT)


def init_raw_params(key):
    k1, k2, k3, k4, k5 = jax.random.split(key, 5)
    return {
        "emb_table": jax.random.normal(k1, (VOCAB, D_NON), jnp.float32) * 0.1,
        "w1": jax.random.normal(k2, (D_COVER, D_HIDDEN), jnp.float32) * 0.05,
        "b1": jax.random.normal(k3, (1, D_HIDDEN), jnp.float32) * 0.01,
        "w2": jax.random.normal(k4, (D_HIDDEN, D_ADAPT), jnp.float32) * 0.05,
        "b2": jax.random.normal(k5, (1, D_ADAPT), jnp.float32) * 0.01,
    }


def prepare_params(raw, matmul_dtype=jnp.bfloat16):
    """One-time parameter prep (hoisted out of the forward).
    Pads to lane-friendly shapes, places the embedding table / second-layer weights into
    their final output columns (so the kernel needs no concat), and optionally casts the
    MXU operands to bf16.  All padding is numerically exact (zero rows/cols, ReLU(0)=0);
    the embedding table always stays f32 so the fused lookup is bit-exact."""
    hpad = D_HIDDEN_PAD - D_HIDDEN
    table_pad = jnp.zeros((VOCAB_PAD, D_OUT), jnp.float32)
    table_pad = table_pad.at[:VOCAB, :D_NON].set(raw["emb_table"])      # cols [0,32): embedding
    w2_pad = jnp.zeros((D_HIDDEN_PAD, D_OUT), jnp.float32)
    w2_pad = w2_pad.at[:D_HIDDEN, D_NON:].set(raw["w2"])                # cols [32,64): adaptor
    b2_pad = jnp.zeros((1, D_OUT), jnp.float32).at[:, D_NON:].set(raw["b2"])
    return {
        "table_pad": table_pad,                                                   # exact f32
        "w1_pad": jnp.pad(raw["w1"], ((0, 0), (0, hpad))).astype(matmul_dtype),
        "b1_pad": jnp.pad(raw["b1"], ((0, 0), (0, hpad))),                        # f32
        "w2_pad": w2_pad.astype(matmul_dtype),
        "b2_pad": b2_pad,                                                         # f32
    }


def reference_forward(x, album_covers_embs, raw):
    b, s = x.shape
    non_emb = jnp.take(raw["emb_table"], x.reshape(-1), axis=0).reshape(b, s, D_NON)
    h = jnp.maximum(album_covers_embs @ raw["w1"] + raw["b1"][0], 0.0)
    adapted = h @ raw["w2"] + raw["b2"][0]
    return jnp.concatenate([non_emb, adapted], axis=-1)


if __name__ == "__main__":
    key = jax.random.PRNGKey(0)
    kp, kx, kc = jax.random.split(key, 3)
    raw = init_raw_params(kp)
    params_f32 = prepare_params(raw, jnp.float32)     # bit-exact path
    params_bf16 = prepare_params(raw)                 # default: bf16 MXU operands (all gens)

    x = jax.random.randint(kx, (B, S), 0, VOCAB, dtype=jnp.int32)
    album_covers_embs = jax.random.normal(kc, (B, S, D_COVER), jnp.float32)

    ref = reference_forward(x, album_covers_embs, raw)

    # f32 path — exact match against the reference.
    out = jax.block_until_ready(concat_album_cover_emb_forward(x, album_covers_embs, params_f32))
    assert out.shape == (B, S, D_OUT)
    np.testing.assert_allclose(np.asarray(out), np.asarray(ref), rtol=1e-5, atol=1e-5)

    # bf16 MXU-operand path (default throughput mode; embedding half exact, adaptor lossy).
    out_bf16 = jax.block_until_ready(
        concat_album_cover_emb_forward(x, album_covers_embs, params_bf16))
    np.testing.assert_allclose(np.asarray(out_bf16), np.asarray(ref), rtol=5e-2, atol=5e-2)

    # Exercise the multi-step ("parallel") tiled path cheaply with a tiny row tile.
    out_tiled = jax.block_until_ready(
        concat_album_cover_emb_forward(x, album_covers_embs, params_f32,
                                       row_tile=8, single_buffer_consts=False))
    np.testing.assert_allclose(np.asarray(out_tiled), np.asarray(ref), rtol=1e-5, atol=1e-5)

    print("KERNEL_OK")
</pallas_src>

<mosaic_0001>
module attributes {stable_mosaic.version = 11 : i64} {
  func.func @_concat_album_cover_kernel(%arg0: i32, %arg1: memref<16x1xi32, #tpu.memory_space<vmem>>, %arg2: memref<128x64xf32, #tpu.memory_space<vmem>>, %arg3: memref<16x64xf32, #tpu.memory_space<vmem>>, %arg4: memref<64x384xf32, #tpu.memory_space<vmem>>, %arg5: memref<1x384xf32, #tpu.memory_space<vmem>>, %arg6: memref<384x64xf32, #tpu.memory_space<vmem>>, %arg7: memref<1x64xf32, #tpu.memory_space<vmem>>, %arg8: memref<16x64xf32, #tpu.memory_space<vmem>>) attributes {dimension_semantics = [#tpu.dimension_semantics<parallel>], iteration_bounds = array<i64: 1>, scalar_prefetch = 0 : i64, scratch_operands = 0 : i64, tpu.core_type = #tpu.core_type<tc>, window_params = [{transform_indices = @transform_0, window_bounds = array<i64: 16, 1>}, {pipeline_mode = #tpu.pipeline_mode<synchronous>, transform_indices = @transform_1, window_bounds = array<i64: 128, 64>}, {transform_indices = @transform_2, window_bounds = array<i64: 16, 64>}, {pipeline_mode = #tpu.pipeline_mode<synchronous>, transform_indices = @transform_3, window_bounds = array<i64: 64, 384>}, {pipeline_mode = #tpu.pipeline_mode<synchronous>, transform_indices = @transform_4, window_bounds = array<i64: 1, 384>}, {pipeline_mode = #tpu.pipeline_mode<synchronous>, transform_indices = @transform_5, window_bounds = array<i64: 384, 64>}, {pipeline_mode = #tpu.pipeline_mode<synchronous>, transform_indices = @transform_6, window_bounds = array<i64: 1, 64>}, {transform_indices = @transform_7, window_bounds = array<i64: 16, 64>}]} {
    %c0 = arith.constant 0 : index
    %c0_0 = arith.constant 0 : index
    %0 = vector.load %arg1[%c0, %c0_0] : memref<16x1xi32, #tpu.memory_space<vmem>>, vector<16x1xi32>
    %1 = tpu.iota {dimensions = array<i32: 1>} : vector<16x128xi32>
    %2 = vector.broadcast %0 : vector<16x1xi32> to vector<16x128xi32>
    %3 = arith.cmpi eq, %2, %1 : vector<16x128xi32>
    %4 = arith.extui %3 : vector<16x128xi1> to vector<16x128xi32>
    %5 = arith.sitofp %4 : vector<16x128xi32> to vector<16x128xf32>
    %c0_1 = arith.constant 0 : index
    %c0_2 = arith.constant 0 : index
    %6 = vector.load %arg2[%c0_1, %c0_2] : memref<128x64xf32, #tpu.memory_space<vmem>>, vector<128x64xf32>
    %cst = arith.constant dense<0.000000e+00> : vector<16x64xf32>
    %7 = tpu.matmul %5, %6, %cst {dimension_numbers = #tpu.dot_dimension_numbers<[1], [0], [0], [1], [0, 0, 1, 1], [], []>} : vector<16x128xf32>, vector<128x64xf32>, vector<16x64xf32> -> vector<16x64xf32>
    %c0_3 = arith.constant 0 : index
    %c0_4 = arith.constant 0 : index
    %8 = vector.load %arg3[%c0_3, %c0_4] : memref<16x64xf32, #tpu.memory_space<vmem>>, vector<16x64xf32>
    %c0_5 = arith.constant 0 : index
    %c0_6 = arith.constant 0 : index
    %9 = vector.load %arg4[%c0_5, %c0_6] : memref<64x384xf32, #tpu.memory_space<vmem>>, vector<64x384xf32>
    %cst_7 = arith.constant dense<0.000000e+00> : vector<16x384xf32>
    %10 = tpu.matmul %8, %9, %cst_7 {dimension_numbers = #tpu.dot_dimension_numbers<[1], [0], [0], [1], [0, 0, 1, 1], [], []>} : vector<16x64xf32>, vector<64x384xf32>, vector<16x384xf32> -> vector<16x384xf32>
    %c0_8 = arith.constant 0 : index
    %c0_9 = arith.constant 0 : index
    %11 = vector.load %arg5[%c0_8, %c0_9] : memref<1x384xf32, #tpu.memory_space<vmem>>, vector<1x384xf32>
    %12 = vector.broadcast %11 : vector<1x384xf32> to vector<16x384xf32>
    %13 = arith.addf %10, %12 : vector<16x384xf32>
    %cst_10 = arith.constant 0.000000e+00 : f32
    %14 = vector.broadcast %cst_10 : f32 to vector<16x384xf32>
    %15 = arith.maximumf %13, %14 : vector<16x384xf32>
    %c0_11 = arith.constant 0 : index
    %c0_12 = arith.constant 0 : index
    %16 = vector.load %arg6[%c0_11, %c0_12] : memref<384x64xf32, #tpu.memory_space<vmem>>, vector<384x64xf32>
    %cst_13 = arith.constant dense<0.000000e+00> : vector<16x64xf32>
    %17 = tpu.matmul %15, %16, %cst_13 {dimension_numbers = #tpu.dot_dimension_numbers<[1], [0], [0], [1], [0, 0, 1, 1], [], []>} : vector<16x384xf32>, vector<384x64xf32>, vector<16x64xf32> -> vector<16x64xf32>
    %18 = arith.addf %7, %17 : vector<16x64xf32>
    %c0_14 = arith.constant 0 : index
    %c0_15 = arith.constant 0 : index
    %19 = vector.load %arg7[%c0_14, %c0_15] : memref<1x64xf32, #tpu.memory_space<vmem>>, vector<1x64xf32>
    %20 = vector.broadcast %19 : vector<1x64xf32> to vector<16x64xf32>
    %21 = arith.addf %18, %20 : vector<16x64xf32>
    %c0_16 = arith.constant 0 : index
    %c0_17 = arith.constant 0 : index
    %22 = vector.load %arg8[%c0_16, %c0_17] : memref<16x64xf32, #tpu.memory_space<vmem>>, vector<16x64xf32>
    tpu.vector_store %arg8[%c0_16, %c0_17], %21 {strides = array<i32>} : memref<16x64xf32, #tpu.memory_space<vmem>>, vector<16x64xf32>,
    return
  }
  func.func @transform_0(%arg0: i32) -> (i32, i32) {
    %c0_i32 = arith.constant 0 : i32
    %c0_i32_0 = arith.constant 0 : i32
    return %arg0, %c0_i32 : i32, i32
  }
  func.func @transform_1(%arg0: i32) -> (i32, i32) {
    %c0_i32 = arith.constant 0 : i32
    %c0_i32_0 = arith.constant 0 : i32
    %c0_i32_1 = arith.constant 0 : i32
    return %c0_i32, %c0_i32_0 : i32, i32
  }
  func.func @transform_2(%arg0: i32) -> (i32, i32) {
    %c0_i32 = arith.constant 0 : i32
    %c0_i32_0 = arith.constant 0 : i32
    return %arg0, %c0_i32 : i32, i32
  }
  func.func @transform_3(%arg0: i32) -> (i32, i32) {
    %c0_i32 = arith.constant 0 : i32
    %c0_i32_0 = arith.constant 0 : i32
    %c0_i32_1 = arith.constant 0 : i32
    return %c0_i32, %c0_i32_0 : i32, i32
  }
  func.func @transform_4(%arg0: i32) -> (i32, i32) {
    %c0_i32 = arith.constant 0 : i32
    %c0_i32_0 = arith.constant 0 : i32
    %c0_i32_1 = arith.constant 0 : i32
    return %c0_i32, %c0_i32_0 : i32, i32
  }
  func.func @transform_5(%arg0: i32) -> (i32, i32) {
    %c0_i32 = arith.constant 0 : i32
    %c0_i32_0 = arith.constant 0 : i32
    %c0_i32_1 = arith.constant 0 : i32
    return %c0_i32, %c0_i32_0 : i32, i32
  }
  func.func @transform_6(%arg0: i32) -> (i32, i32) {
    %c0_i32 = arith.constant 0 : i32
    %c0_i32_0 = arith.constant 0 : i32
    %c0_i32_1 = arith.constant 0 : i32
    return %c0_i32, %c0_i32_0 : i32, i32
  }
  func.func @transform_7(%arg0: i32) -> (i32, i32) {
    %c0_i32 = arith.constant 0 : i32
    %c0_i32_0 = arith.constant 0 : i32
    return %arg0, %c0_i32 : i32, i32
  }
}

</mosaic_0001>

<llo_original>
// kernel: tpu_custom_call.1
$region0: #{tpu_custom_call.1}
  #allocation0 [shape = 'u32[]', space=smem, size = 0x4, offset = 0x4, fixed_abs, tag = 'smem constant byte address 0x4 - core index']
  #allocation1 [shape = 'u32[144,128]{1,0:T(1,128)}', space=vmem, size = 0x12000, scoped, tag = 'internal scratch']
  %s0 = inlined_call_operand.vmem [shape: s32[16,1], index: 0, kind: input, shape index: {}]
  %s1 = inlined_call_operand.vmem [shape: f32[128,64], index: 1, kind: input, shape index: {}]
  %s2 = inlined_call_operand.vmem [shape: f32[16,64], index: 2, kind: input, shape index: {}]
  %s3 = inlined_call_operand.vmem [shape: f32[64,384], index: 3, kind: input, shape index: {}]
  %s4 = inlined_call_operand.vmem [shape: f32[1,384], index: 4, kind: input, shape index: {}]
  %s5 = inlined_call_operand.vmem [shape: f32[384,64], index: 5, kind: input, shape index: {}]
  %s6 = inlined_call_operand.vmem [shape: f32[1,64], index: 6, kind: input, shape index: {}]
  %s7 = inlined_call_operand.hbm [shape: f32[16,64], index: 7, kind: output, shape index: {}]
  %s8 = sld [smem:[#allocation0]]
  $region38: #{tpu_custom_call.1} parent=0
    _
  %s10 = ssub.s32 1, %s8
  %s11 = scalar_select 0, %s10, %s8
  $region1: #{tpu_custom_call.1} parent=0
    #allocation2 [shape = 'u8[8192]{0}', space=vmem, size = 0x2000, scoped, tag = 'output window, operand 0, single buffered']
    #allocation3 [shape = 's32[1]{0}', space=sflag, size = 0x4, scoped, tag = 'scoped memory for tpu_custom_call.1']
    %12 = vsyncpa [#allocation3], 0
    // Predicated region
    $region2: #{tpu_custom_call.1} parent=1 // pred_check
      _
    $region3: #{tpu_custom_call.1} parent=1 // pred_check_branch
      %14 = sbr.rel (0) target = $region5
    $region4: #{tpu_custom_call.1} parent=1 // pred_region
      _
    $region5: #{tpu_custom_call.1} parent=1 // pred_fallthru
      _
    // Predicated region
    $region6: #{tpu_custom_call.1} parent=1 // pred_check
      _
    $region7: #{tpu_custom_call.1} parent=1 // pred_check_branch
      %16 = sbr.rel (0) target = $region9
    $region8: #{tpu_custom_call.1} parent=1 // pred_region
      _
    $region9: #{tpu_custom_call.1} parent=1 // pred_fallthru
      _
    // Predicated region
    $region10: #{tpu_custom_call.1} parent=1 // pred_check
      _
    $region11: #{tpu_custom_call.1} parent=1 // pred_check_branch
      %18 = sbr.rel (0) target = $region13
    $region12: #{tpu_custom_call.1} parent=1 // pred_region
      _
    $region13: #{tpu_custom_call.1} parent=1 // pred_fallthru
      _
    // Predicated region
    $region14: #{tpu_custom_call.1} parent=1 // pred_check
      _
    $region15: #{tpu_custom_call.1} parent=1 // pred_check_branch
      %20 = sbr.rel (0) target = $region17
    $region16: #{tpu_custom_call.1} parent=1 // pred_region
      _
    $region17: #{tpu_custom_call.1} parent=1 // pred_fallthru
      _
    // Predicated region
    $region18: #{tpu_custom_call.1} parent=1 // pred_check
      _
    $region19: #{tpu_custom_call.1} parent=1 // pred_check_branch
      %22 = sbr.rel (0) target = $region21
    $region20: #{tpu_custom_call.1} parent=1 // pred_region
      _
    $region21: #{tpu_custom_call.1} parent=1 // pred_fallthru
      _
    // Predicated region
    $region22: #{tpu_custom_call.1} parent=1 // pred_check
      _
    $region23: #{tpu_custom_call.1} parent=1 // pred_check_branch
      %24 = sbr.rel (0) target = $region25
    $region24: #{tpu_custom_call.1} parent=1 // pred_region
      _
    $region25: #{tpu_custom_call.1} parent=1 // pred_fallthru
      _
    // Predicated region
    $region26: #{tpu_custom_call.1} parent=1 // pred_check
      _
    $region27: #{tpu_custom_call.1} parent=1 // pred_check_branch
      %26 = sbr.rel (0) target = $region29
    $region28: #{tpu_custom_call.1} parent=1 // pred_region
      _
    $region29: #{tpu_custom_call.1} parent=1 // pred_fallthru
      _
    %v27 = vld [vmem:[%s0] sm:$0xff]
    %v28 = vld [vmem:[%s0 + $0x8] sm:$0xff]
    %v29 = vlaneseq
    %v30 = vand.u32 %v29, 127
    %31 = vset.pattern.permute.xlu0 0
    %32 = vperm.xlu0 %31, %v27
    %v33 = vpop.permute.xlu0 %32
    %34 = vset.pattern.permute.xlu0 0
    %35 = vperm.xlu0 %34, %v28
    %v36 = vpop.permute.xlu0 %35
    %vm37 = vcmp.eq.s32.totalorder %v33, %v30
    %vm38 = vcmp.eq.s32.totalorder %v36, %v30
    %v39 = vsel %vm37, 1, 0
    %v40 = vsel %vm38, 1, 0
    %v41 = vcvt.s32.f32 %v39
    %v42 = vcvt.s32.f32 %v40
    %v43 = vld [vmem:[%s1] sm:$0xff]
    %v44 = vld [vmem:[%s1 + $0x8] sm:$0xff]
    %v45 = vld [vmem:[%s1 + $0x10] sm:$0xff]
    %v46 = vld [vmem:[%s1 + $0x18] sm:$0xff]
    %v47 = vld [vmem:[%s1 + $0x20] sm:$0xff]
    %v48 = vld [vmem:[%s1 + $0x28] sm:$0xff]
    %v49 = vld [vmem:[%s1 + $0x30] sm:$0xff]
    %v50 = vld [vmem:[%s1 + $0x38] sm:$0xff]
    %v51 = vld [vmem:[%s1 + $0x40] sm:$0xff]
    %v52 = vld [vmem:[%s1 + $0x48] sm:$0xff]
    %v53 = vld [vmem:[%s1 + $0x50] sm:$0xff]
    %v54 = vld [vmem:[%s1 + $0x58] sm:$0xff]
    %v55 = vld [vmem:[%s1 + $0x60] sm:$0xff]
    %v56 = vld [vmem:[%s1 + $0x68] sm:$0xff]
    %v57 = vld [vmem:[%s1 + $0x70] sm:$0xff]
    %v58 = vld [vmem:[%s1 + $0x78] sm:$0xff]
    %v59 = vld [vmem:[%s2] sm:$0xff]
    %v60 = vld [vmem:[%s2 + $0x8] sm:$0xff]
    %v61 = vld [vmem:[%s3] sm:$0xff]
    %v62 = vld [vmem:[%s3 + $0x8] sm:$0xff]
    %v63 = vld [vmem:[%s3 + $0x10] sm:$0xff]
    %v64 = vld [vmem:[%s3 + $0x18] sm:$0xff]
    %v65 = vld [vmem:[%s3 + $0x20] sm:$0xff]
    %v66 = vld [vmem:[%s3 + $0x28] sm:$0xff]
    %v67 = vld [vmem:[%s3 + $0x30] sm:$0xff]
    %v68 = vld [vmem:[%s3 + $0x38] sm:$0xff]
    %v69 = vld [vmem:[%s3 + $0x40] sm:$0xff]
    %v70 = vld [vmem:[%s3 + $0x48] sm:$0xff]
    %v71 = vld [vmem:[%s3 + $0x50] sm:$0xff]
    %v72 = vld [vmem:[%s3 + $0x58] sm:$0xff]
    %v73 = vld [vmem:[%s3 + $0x60] sm:$0xff]
    %v74 = vld [vmem:[%s3 + $0x68] sm:$0xff]
    %v75 = vld [vmem:[%s3 + $0x70] sm:$0xff]
    %v76 = vld [vmem:[%s3 + $0x78] sm:$0xff]
    %v77 = vld [vmem:[%s3 + $0x80] sm:$0xff]
    %v78 = vld [vmem:[%s3 + $0x88] sm:$0xff]
    %v79 = vld [vmem:[%s3 + $0x90] sm:$0xff]
    %v80 = vld [vmem:[%s3 + $0x98] sm:$0xff]
    %v81 = vld [vmem:[%s3 + $0xa0] sm:$0xff]
    %v82 = vld [vmem:[%s3 + $0xa8] sm:$0xff]
    %v83 = vld [vmem:[%s3 + $0xb0] sm:$0xff]
    %v84 = vld [vmem:[%s3 + $0xb8] sm:$0xff]
    %v85 = vld [vmem:[%s4] sm:$0x7]
    %v87 = vlaneseq
    %v88 = vshrl.u32 %v87, 7
    %v89 = vsub.s32 0, %v88
    %v90 = vrot.slane %v85, %v89
    %v91 = vlaneseq
    %v92 = vshrl.u32 %v91, 7
    %v93 = vsub.s32 1, %v92
    %v94 = vrot.slane %v85, %v93
    %v95 = vlaneseq
    %v96 = vshrl.u32 %v95, 7
    %v97 = vsub.s32 2, %v96
    %v98 = vrot.slane %v85, %v97
    %vm102 = vcmask 523264
    %v104 = vsel %vm102, %v59, 0
    %v107 = vsel %vm102, %v60, 0
    %109 = vmatprep.subr.mxu0 %v62
    %110 = vmatpush1.msra.mxu0 %v61
    %111 = vmatprep.subr.mxu0 %v65
    %112 = vmatpush1.msra.mxu0 %v64
    %113 = vmatprep.subr.mxu0 %v68
    %114 = vmatpush1.msra.mxu0 %v67
    %115 = vmatprep.subr.mxu0 %v71
    %116 = vmatpush1.msra.mxu0 %v70
    %117 = vmatprep.subr.mxu0 %v74
    %118 = vmatpush1.msra.mxu0 %v73
    %119 = vmatprep.subr.mxu0 %v77
    %120 = vmatpush1.msra.mxu0 %v76
    %121 = vmatprep.subr.mxu0 %v80
    %122 = vmatpush1.msra.mxu0 %v79
    %123 = vmatprep.subr.mxu0 %v83
    %124 = vmatpush1.msra.mxu0 %v82
    %125 = vmatprep.subr.mxu0 0.0
    %126 = vmatpush1.msra.mxu0 0.0
    %127 = vmatprep.subr.mxu0 0.0
    %128 = vmatpush1.msra.mxu0 0.0
    %129 = vmatprep.subr.mxu0 0.0
    %130 = vmatpush1.msra.mxu0 0.0
    %131 = vmatprep.subr.mxu0 0.0
    %132 = vmatpush1.msra.mxu0 0.0
    %133 = vmatprep.subr.mxu0 0.0
    %134 = vmatpush1.msra.mxu0 0.0
    %135 = vmatprep.subr.mxu0 0.0
    %136 = vmatpush1.msra.mxu0 0.0
    %137 = vmatprep.subr.mxu0 0.0
    %138 = vmatpush1.msra.mxu0 0.0
    %139 = vmatprep.subr.mxu0 0.0
    %140 = vmatpush1.msra.mxu0 0.0
    %141 = vmatprep.subr.mxu0 0.0
    %142 = vmatpush1.msra.mxu0 0.0
    %143 = vmatprep.subr.mxu0 0.0
    %144 = vmatpush1.msra.mxu0 0.0
    %145 = vmatprep.subr.mxu0 0.0
    %146 = vmatpush1.msra.mxu0 0.0
    %147 = vmatprep.subr.mxu0 0.0
    %148 = vmatpush1.msra.mxu0 0.0
    %149 = vmatprep.subr.mxu0 0.0
    %150 = vmatpush1.msra.mxu0 0.0
    %151 = vmatprep.subr.mxu0 0.0
    %152 = vmatpush1.msra.mxu0 0.0
    %153 = vmatprep.subr.mxu0 0.0
    %154 = vmatpush1.msra.mxu0 0.0
    %155 = vmatprep.subr.mxu0 0.0
    %156 = vmatpush1.msra.mxu0 0.0
    %157 = vmatprep.subr.mxu0 0.0
    %158 = vmatpush1.msra.mxu0 0.0
    %159 = vmatprep.subr.mxu0 0.0
    %160 = vmatpush1.msra.mxu0 0.0
    %161 = vmatprep.subr.mxu0 0.0
    %162 = vmatpush1.msra.mxu0 0.0
    %163 = vmatprep.subr.mxu0 0.0
    %164 = vmatpush1.msra.mxu0 0.0
    %165 = vmatprep.subr.mxu0 0.0
    %166 = vmatpush1.msra.mxu0 0.0
    %167 = vmatprep.subr.mxu0 0.0
    %168 = vmatpush1.msra.mxu0 0.0
    %169 = vmatprep.subr.mxu0 0.0
    %170 = vmatpush1.msra.mxu0 0.0
    %171 = vmatprep.subr.mxu0 0.0
    %172 = vmatpush1.msra.mxu0 0.0
    %173 = vmatprep.mubr.f32.mxu0 0.0
    %174 = vmatmul.mubr.f32.gmra.mrb[0].mxu0 %v104
    %v175 = vpop.f32.mrb[0].mxu0
    %v176 = vadd.f32 %v90, %v175
    %v177 = vpop.f32.mrb[0].mxu0
    %v178 = vadd.f32 %v94, %v177
    %179 = vmatprep.mubr.f32.mxu0 0.0
    %180 = vmatmul.mubr.f32.gmra.mrb[0].mxu0 %v107
    %v181 = vpop.f32.mrb[0].mxu0
    %v182 = vadd.f32 %v90, %v181
    %v183 = vpop.f32.mrb[0].mxu0
    %v184 = vadd.f32 %v94, %v183
    %185 = vdwg.mxu0
    %186 = vmatprep.subr.mxu0 0.0
    %187 = vmatpush1.msra.mxu0 %v63
    %188 = vmatprep.subr.mxu0 0.0
    %189 = vmatpush1.msra.mxu0 %v66
    %190 = vmatprep.subr.mxu0 0.0
    %191 = vmatpush1.msra.mxu0 %v69
    %192 = vmatprep.subr.mxu0 0.0
    %193 = vmatpush1.msra.mxu0 %v72
    %194 = vmatprep.subr.mxu0 0.0
    %195 = vmatpush1.msra.mxu0 %v75
    %196 = vmatprep.subr.mxu0 0.0
    %197 = vmatpush1.msra.mxu0 %v78
    %198 = vmatprep.subr.mxu0 0.0
    %199 = vmatpush1.msra.mxu0 %v81
    %200 = vmatprep.subr.mxu0 0.0
    %201 = vmatpush1.msra.mxu0 %v84
    %202 = vmatprep.subr.mxu0 0.0
    %203 = vmatpush1.msra.mxu0 0.0
    %204 = vmatprep.subr.mxu0 0.0
    %205 = vmatpush1.msra.mxu0 0.0
    %206 = vmatprep.subr.mxu0 0.0
    %207 = vmatpush1.msra.mxu0 0.0
    %208 = vmatprep.subr.mxu0 0.0
    %209 = vmatpush1.msra.mxu0 0.0
    %210 = vmatprep.subr.mxu0 0.0
    %211 = vmatpush1.msra.mxu0 0.0
    %212 = vmatprep.subr.mxu0 0.0
    %213 = vmatpush1.msra.mxu0 0.0
    %214 = vmatprep.subr.mxu0 0.0
    %215 = vmatpush1.msra.mxu0 0.0
    %216 = vmatprep.subr.mxu0 0.0
    %217 = vmatpush1.msra.mxu0 0.0
    %218 = vmatprep.subr.mxu0 0.0
    %219 = vmatpush1.msra.mxu0 0.0
    %220 = vmatprep.subr.mxu0 0.0
    %221 = vmatpush1.msra.mxu0 0.0
    %222 = vmatprep.subr.mxu0 0.0
    %223 = vmatpush1.msra.mxu0 0.0
    %224 = vmatprep.subr.mxu0 0.0
    %225 = vmatpush1.msra.mxu0 0.0
    %226 = vmatprep.subr.mxu0 0.0
    %227 = vmatpush1.msra.mxu0 0.0
    %228 = vmatprep.subr.mxu0 0.0
    %229 = vmatpush1.msra.mxu0 0.0
    %230 = vmatprep.subr.mxu0 0.0
    %231 = vmatpush1.msra.mxu0 0.0
    %232 = vmatprep.subr.mxu0 0.0
    %233 = vmatpush1.msra.mxu0 0.0
    %234 = vmatprep.subr.mxu0 0.0
    %235 = vmatpush1.msra.mxu0 0.0
    %236 = vmatprep.subr.mxu0 0.0
    %237 = vmatpush1.msra.mxu0 0.0
    %238 = vmatprep.subr.mxu0 0.0
    %239 = vmatpush1.msra.mxu0 0.0
    %240 = vmatprep.subr.mxu0 0.0
    %241 = vmatpush1.msra.mxu0 0.0
    %242 = vmatprep.subr.mxu0 0.0
    %243 = vmatpush1.msra.mxu0 0.0
    %244 = vmatprep.subr.mxu0 0.0
    %245 = vmatpush1.msra.mxu0 0.0
    %246 = vmatprep.subr.mxu0 0.0
    %247 = vmatpush1.msra.mxu0 0.0
    %248 = vmatprep.subr.mxu0 0.0
    %249 = vmatpush1.msra.mxu0 0.0
    %250 = vmatprep.mubr.f32.mxu0 0.0
    %251 = vmatmul.mubr.f32.gmra.mrb[0].mxu0 %v104
    %v252 = vpop.f32.mrb[0].mxu0
    %v253 = vadd.f32 %v98, %v252
    %v254 = vpop.f32.mrb[0].mxu0
    %255 = vmatprep.mubr.f32.mxu0 0.0
    %256 = vmatmul.mubr.f32.gmra.mrb[0].mxu0 %v107
    %v257 = vpop.f32.mrb[0].mxu0
    %v258 = vadd.f32 %v98, %v257
    %v259 = vpop.f32.mrb[0].mxu0
    %260 = vdwg.mxu0
    %v261 = vmax.f32 %v176, 0.0
    %v262 = vmax.f32 %v178, 0.0
    %v263 = vmax.f32 %v253, 0.0
    %v264 = vmax.f32 %v182, 0.0
    %v265 = vmax.f32 %v184, 0.0
    %v266 = vmax.f32 %v258, 0.0
    %v267 = vld [vmem:[%s5] sm:$0xff]
    %v268 = vld [vmem:[%s5 + $0x8] sm:$0xff]
    %v269 = vld [vmem:[%s5 + $0x10] sm:$0xff]
    %v270 = vld [vmem:[%s5 + $0x18] sm:$0xff]
    %v271 = vld [vmem:[%s5 + $0x20] sm:$0xff]
    %v272 = vld [vmem:[%s5 + $0x28] sm:$0xff]
    %v273 = vld [vmem:[%s5 + $0x30] sm:$0xff]
    %v274 = vld [vmem:[%s5 + $0x38] sm:$0xff]
    %v275 = vld [vmem:[%s5 + $0x40] sm:$0xff]
    %v276 = vld [vmem:[%s5 + $0x48] sm:$0xff]
    %v277 = vld [vmem:[%s5 + $0x50] sm:$0xff]
    %v278 = vld [vmem:[%s5 + $0x58] sm:$0xff]
    %v279 = vld [vmem:[%s5 + $0x60] sm:$0xff]
    %v280 = vld [vmem:[%s5 + $0x68] sm:$0xff]
    %v281 = vld [vmem:[%s5 + $0x70] sm:$0xff]
    %v282 = vld [vmem:[%s5 + $0x78] sm:$0xff]
    %v283 = vld [vmem:[%s5 + $0x80] sm:$0xff]
    %v284 = vld [vmem:[%s5 + $0x88] sm:$0xff]
    %v285 = vld [vmem:[%s5 + $0x90] sm:$0xff]
    %v286 = vld [vmem:[%s5 + $0x98] sm:$0xff]
    %v287 = vld [vmem:[%s5 + $0xa0] sm:$0xff]
    %v288 = vld [vmem:[%s5 + $0xa8] sm:$0xff]
    %v289 = vld [vmem:[%s5 + $0xb0] sm:$0xff]
    %v290 = vld [vmem:[%s5 + $0xb8] sm:$0xff]
    %v291 = vld [vmem:[%s5 + $0xc0] sm:$0xff]
    %v292 = vld [vmem:[%s5 + $0xc8] sm:$0xff]
    %v293 = vld [vmem:[%s5 + $0xd0] sm:$0xff]
    %v294 = vld [vmem:[%s5 + $0xd8] sm:$0xff]
    %v295 = vld [vmem:[%s5 + $0xe0] sm:$0xff]
    %v296 = vld [vmem:[%s5 + $0xe8] sm:$0xff]
    %v297 = vld [vmem:[%s5 + $0xf0] sm:$0xff]
    %v298 = vld [vmem:[%s5 + $0xf8] sm:$0xff]
    %v299 = vld [vmem:[%s5 + $0x100] sm:$0xff]
    %v300 = vld [vmem:[%s5 + $0x108] sm:$0xff]
    %v301 = vld [vmem:[%s5 + $0x110] sm:$0xff]
    %v302 = vld [vmem:[%s5 + $0x118] sm:$0xff]
    %v303 = vld [vmem:[%s5 + $0x120] sm:$0xff]
    %v304 = vld [vmem:[%s5 + $0x128] sm:$0xff]
    %v305 = vld [vmem:[%s5 + $0x130] sm:$0xff]
    %v306 = vld [vmem:[%s5 + $0x138] sm:$0xff]
    %v307 = vld [vmem:[%s5 + $0x140] sm:$0xff]
    %v308 = vld [vmem:[%s5 + $0x148] sm:$0xff]
    %v309 = vld [vmem:[%s5 + $0x150] sm:$0xff]
    %v310 = vld [vmem:[%s5 + $0x158] sm:$0xff]
    %v311 = vld [vmem:[%s5 + $0x160] sm:$0xff]
    %v312 = vld [vmem:[%s5 + $0x168] sm:$0xff]
    %v313 = vld [vmem:[%s5 + $0x170] sm:$0xff]
    %v314 = vld [vmem:[%s5 + $0x178] sm:$0xff]
    %315 = vmatprep.subr.mxu0 0.0
    %316 = vmatpush1.msra.mxu0 %v267
    %317 = vmatprep.subr.mxu0 0.0
    %318 = vmatpush1.msra.mxu0 %v268
    %319 = vmatprep.subr.mxu0 0.0
    %320 = vmatpush1.msra.mxu0 %v269
    %321 = vmatprep.subr.mxu0 0.0
    %322 = vmatpush1.msra.mxu0 %v270
    %323 = vmatprep.subr.mxu0 0.0
    %324 = vmatpush1.msra.mxu0 %v271
    %325 = vmatprep.subr.mxu0 0.0
    %326 = vmatpush1.msra.mxu0 %v272
    %327 = vmatprep.subr.mxu0 0.0
    %328 = vmatpush1.msra.mxu0 %v273
    %329 = vmatprep.subr.mxu0 0.0
    %330 = vmatpush1.msra.mxu0 %v274
    %331 = vmatprep.subr.mxu0 0.0
    %332 = vmatpush1.msra.mxu0 %v275
    %333 = vmatprep.subr.mxu0 0.0
    %334 = vmatpush1.msra.mxu0 %v276
    %335 = vmatprep.subr.mxu0 0.0
    %336 = vmatpush1.msra.mxu0 %v277
    %337 = vmatprep.subr.mxu0 0.0
    %338 = vmatpush1.msra.mxu0 %v278
    %339 = vmatprep.subr.mxu0 0.0
    %340 = vmatpush1.msra.mxu0 %v279
    %341 = vmatprep.subr.mxu0 0.0
    %342 = vmatpush1.msra.mxu0 %v280
    %343 = vmatprep.subr.mxu0 0.0
    %344 = vmatpush1.msra.mxu0 %v281
    %345 = vmatprep.subr.mxu0 0.0
    %346 = vmatpush1.msra.mxu0 %v282
    %347 = vmatprep.subr.mxu0 0.0
    %348 = vmatpush1.msra.mxu0 %v283
    %349 = vmatprep.subr.mxu0 0.0
    %350 = vmatpush1.msra.mxu0 %v284
    %351 = vmatprep.subr.mxu0 0.0
    %352 = vmatpush1.msra.mxu0 %v285
    %353 = vmatprep.subr.mxu0 0.0
    %354 = vmatpush1.msra.mxu0 %v286
    %355 = vmatprep.subr.mxu0 0.0
    %356 = vmatpush1.msra.mxu0 %v287
    %357 = vmatprep.subr.mxu0 0.0
    %358 = vmatpush1.msra.mxu0 %v288
    %359 = vmatprep.subr.mxu0 0.0
    %360 = vmatpush1.msra.mxu0 %v289
    %361 = vmatprep.subr.mxu0 0.0
    %362 = vmatpush1.msra.mxu0 %v290
    %363 = vmatprep.subr.mxu0 0.0
    %364 = vmatpush1.msra.mxu0 %v291
    %365 = vmatprep.subr.mxu0 0.0
    %366 = vmatpush1.msra.mxu0 %v292
    %367 = vmatprep.subr.mxu0 0.0
    %368 = vmatpush1.msra.mxu0 %v293
    %369 = vmatprep.subr.mxu0 0.0
    %370 = vmatpush1.msra.mxu0 %v294
    %371 = vmatprep.subr.mxu0 0.0
    %372 = vmatpush1.msra.mxu0 %v295
    %373 = vmatprep.subr.mxu0 0.0
    %374 = vmatpush1.msra.mxu0 %v296
    %375 = vmatprep.subr.mxu0 0.0
    %376 = vmatpush1.msra.mxu0 %v297
    %377 = vmatprep.subr.mxu0 0.0
    %378 = vmatpush1.msra.mxu0 %v298
    %379 = vmatprep.mubr.f32.mxu0 %v262
    %380 = vmatmul.mubr.f32.gmra.mrb[0].mxu0 %v261
    %v381 = vpop.f32.mrb[0].mxu0
    %v382 = vadd.f32 0.0, %v381
    %v383 = vpop.f32.mrb[0].mxu0
    %384 = vmatprep.mubr.f32.mxu0 %v265
    %385 = vmatmul.mubr.f32.gmra.mrb[0].mxu0 %v264
    %v386 = vpop.f32.mrb[0].mxu0
    %v387 = vadd.f32 0.0, %v386
    %v388 = vpop.f32.mrb[0].mxu0
    %389 = vdwg.mxu0
    %390 = vmatprep.subr.mxu0 0.0
    %391 = vmatpush1.msra.mxu0 %v299
    %392 = vmatprep.subr.mxu0 0.0
    %393 = vmatpush1.msra.mxu0 %v300
    %394 = vmatprep.subr.mxu0 0.0
    %395 = vmatpush1.msra.mxu0 %v301
    %396 = vmatprep.subr.mxu0 0.0
    %397 = vmatpush1.msra.mxu0 %v302
    %398 = vmatprep.subr.mxu0 0.0
    %399 = vmatpush1.msra.mxu0 %v303
    %400 = vmatprep.subr.mxu0 0.0
    %401 = vmatpush1.msra.mxu0 %v304
    %402 = vmatprep.subr.mxu0 0.0
    %403 = vmatpush1.msra.mxu0 %v305
    %404 = vmatprep.subr.mxu0 0.0
    %405 = vmatpush1.msra.mxu0 %v306
    %406 = vmatprep.subr.mxu0 0.0
    %407 = vmatpush1.msra.mxu0 %v307
    %408 = vmatprep.subr.mxu0 0.0
    %409 = vmatpush1.msra.mxu0 %v308
    %410 = vmatprep.subr.mxu0 0.0
    %411 = vmatpush1.msra.mxu0 %v309
    %412 = vmatprep.subr.mxu0 0.0
    %413 = vmatpush1.msra.mxu0 %v310
    %414 = vmatprep.subr.mxu0 0.0
    %415 = vmatpush1.msra.mxu0 %v311
    %416 = vmatprep.subr.mxu0 0.0
    %417 = vmatpush1.msra.mxu0 %v312
    %418 = vmatprep.subr.mxu0 0.0
    %419 = vmatpush1.msra.mxu0 %v313
    %420 = vmatprep.subr.mxu0 0.0
    %421 = vmatpush1.msra.mxu0 %v314
    %422 = vmatprep.subr.mxu0 0.0
    %423 = vmatpush1.msra.mxu0 0.0
    %424 = vmatprep.subr.mxu0 0.0
    %425 = vmatpush1.msra.mxu0 0.0
    %426 = vmatprep.subr.mxu0 0.0
    %427 = vmatpush1.msra.mxu0 0.0
    %428 = vmatprep.subr.mxu0 0.0
    %429 = vmatpush1.msra.mxu0 0.0
    %430 = vmatprep.subr.mxu0 0.0
    %431 = vmatpush1.msra.mxu0 0.0
    %432 = vmatprep.subr.mxu0 0.0
    %433 = vmatpush1.msra.mxu0 0.0
    %434 = vmatprep.subr.mxu0 0.0
    %435 = vmatpush1.msra.mxu0 0.0
    %436 = vmatprep.subr.mxu0 0.0
    %437 = vmatpush1.msra.mxu0 0.0
    %438 = vmatprep.subr.mxu0 0.0
    %439 = vmatpush1.msra.mxu0 0.0
    %440 = vmatprep.subr.mxu0 0.0
    %441 = vmatpush1.msra.mxu0 0.0
    %442 = vmatprep.subr.mxu0 0.0
    %443 = vmatpush1.msra.mxu0 0.0
    %444 = vmatprep.subr.mxu0 0.0
    %445 = vmatpush1.msra.mxu0 0.0
    %446 = vmatprep.subr.mxu0 0.0
    %447 = vmatpush1.msra.mxu0 0.0
    %448 = vmatprep.subr.mxu0 0.0
    %449 = vmatpush1.msra.mxu0 0.0
    %450 = vmatprep.subr.mxu0 0.0
    %451 = vmatpush1.msra.mxu0 0.0
    %452 = vmatprep.subr.mxu0 0.0
    %453 = vmatpush1.msra.mxu0 0.0
    %454 = vmatprep.mubr.f32.mxu0 0.0
    %455 = vmatmul.mubr.f32.gmra.mrb[0].mxu0 %v263
    %v456 = vpop.f32.mrb[0].mxu0
    %v457 = vadd.f32 %v382, %v456
    %v458 = vpop.f32.mrb[0].mxu0
    %459 = vmatprep.mubr.f32.mxu0 0.0
    %460 = vmatmul.mubr.f32.gmra.mrb[0].mxu0 %v266
    %v461 = vpop.f32.mrb[0].mxu0
    %v462 = vadd.f32 %v387, %v461
    %v463 = vpop.f32.mrb[0].mxu0
    %464 = vdwg.mxu0
    %465 = vmatprep.subr.mxu0 0.0
    %466 = vmatpush1.msra.mxu0 %v43
    %467 = vmatprep.subr.mxu0 0.0
    %468 = vmatpush1.msra.mxu0 %v44
    %469 = vmatprep.subr.mxu0 0.0
    %470 = vmatpush1.msra.mxu0 %v45
    %471 = vmatprep.subr.mxu0 0.0
    %472 = vmatpush1.msra.mxu0 %v46
    %473 = vmatprep.subr.mxu0 0.0
    %474 = vmatpush1.msra.mxu0 %v47
    %475 = vmatprep.subr.mxu0 0.0
    %476 = vmatpush1.msra.mxu0 %v48
    %477 = vmatprep.subr.mxu0 0.0
    %478 = vmatpush1.msra.mxu0 %v49
    %479 = vmatprep.subr.mxu0 0.0
    %480 = vmatpush1.msra.mxu0 %v50
    %481 = vmatprep.subr.mxu0 0.0
    %482 = vmatpush1.msra.mxu0 %v51
    %483 = vmatprep.subr.mxu0 0.0
    %484 = vmatpush1.msra.mxu0 %v52
    %485 = vmatprep.subr.mxu0 0.0
    %486 = vmatpush1.msra.mxu0 %v53
    %487 = vmatprep.subr.mxu0 0.0
    %488 = vmatpush1.msra.mxu0 %v54
    %489 = vmatprep.subr.mxu0 0.0
    %490 = vmatpush1.msra.mxu0 %v55
    %491 = vmatprep.subr.mxu0 0.0
    %492 = vmatpush1.msra.mxu0 %v56
    %493 = vmatprep.subr.mxu0 0.0
    %494 = vmatpush1.msra.mxu0 %v57
    %495 = vmatprep.subr.mxu0 0.0
    %496 = vmatpush1.msra.mxu0 %v58
    %497 = vmatprep.subr.mxu0 0.0
    %498 = vmatpush1.msra.mxu0 0.0
    %499 = vmatprep.subr.mxu0 0.0
    %500 = vmatpush1.msra.mxu0 0.0
    %501 = vmatprep.subr.mxu0 0.0
    %502 = vmatpush1.msra.mxu0 0.0
    %503 = vmatprep.subr.mxu0 0.0
    %504 = vmatpush1.msra.mxu0 0.0
    %505 = vmatprep.subr.mxu0 0.0
    %506 = vmatpush1.msra.mxu0 0.0
    %507 = vmatprep.subr.mxu0 0.0
    %508 = vmatpush1.msra.mxu0 0.0
    %509 = vmatprep.subr.mxu0 0.0
    %510 = vmatpush1.msra.mxu0 0.0
    %511 = vmatprep.subr.mxu0 0.0
    %512 = vmatpush1.msra.mxu0 0.0
    %513 = vmatprep.subr.mxu0 0.0
    %514 = vmatpush1.msra.mxu0 0.0
    %515 = vmatprep.subr.mxu0 0.0
    %516 = vmatpush1.msra.mxu0 0.0
    %517 = vmatprep.subr.mxu0 0.0
    %518 = vmatpush1.msra.mxu0 0.0
    %519 = vmatprep.subr.mxu0 0.0
    %520 = vmatpush1.msra.mxu0 0.0
    %521 = vmatprep.subr.mxu0 0.0
    %522 = vmatpush1.msra.mxu0 0.0
    %523 = vmatprep.subr.mxu0 0.0
    %524 = vmatpush1.msra.mxu0 0.0
    %525 = vmatprep.subr.mxu0 0.0
    %526 = vmatpush1.msra.mxu0 0.0
    %527 = vmatprep.subr.mxu0 0.0
    %528 = vmatpush1.msra.mxu0 0.0
    %529 = vmatprep.mubr.f32.mxu0 0.0
    %530 = vmatmul.mubr.f32.gmra.mrb[0].mxu0 %v41
    %v531 = vpop.f32.mrb[0].mxu0
    %v532 = vadd.f32 %v457, %v531
    %v533 = vpop.f32.mrb[0].mxu0
    %534 = vmatprep.mubr.f32.mxu0 0.0
    %535 = vmatmul.mubr.f32.gmra.mrb[0].mxu0 %v42
    %v536 = vpop.f32.mrb[0].mxu0
    %v537 = vadd.f32 %v462, %v536
    %v538 = vpop.f32.mrb[0].mxu0
    %539 = vdwg.mxu0
    %v540 = vld [vmem:[%s6] sm:$0x1]
    %v542 = vlaneseq
    %v543 = vshrl.u32 %v542, 7
    %v544 = vsub.s32 0, %v543
    %v545 = vrot.slane %v540, %v544
    %v547 = vadd.f32 %v532, %v545
    %v548 = vadd.f32 %v537, %v545
    %549 = vst.msk [vmem:[#allocation2] sm:$0xff] %vm102, %v547
    %550 = vst.msk [vmem:[#allocation2 + $0x8] sm:$0xff] %vm102, %v548
    // Predicated region
    $region30: #{tpu_custom_call.1} parent=1 // pred_check
      _
    $region31: #{tpu_custom_call.1} parent=1 // pred_check_branch
      %552 = sbr.rel (0) target = $region33
    $region32: #{tpu_custom_call.1} parent=1 // pred_region
      %s554 = ssub.s32 256, 256
      %555 = vsyncadd [#allocation3], %s554
      %s556 = sshll.u32 [#allocation2], 4
      %s557 = int_to_ptr.vmem [resolvable:$true] %s556
      %562 = dma.vmem_to_hbm [thread:$0]  %s557, 256, %s7, [#allocation3], 128, 128, 8
    $region33: #{tpu_custom_call.1} parent=1 // pred_fallthru
      _
    // Predicated region
    $region34: #{tpu_custom_call.1} parent=1 // pred_check
      _
    $region35: #{tpu_custom_call.1} parent=1 // pred_check_branch
      %564 = sbr.rel (0) target = $region37
    $region36: #{tpu_custom_call.1} parent=1 // pred_region
      %565 = dma.done [#allocation3], 256
    $region37: #{tpu_custom_call.1} parent=1 // pred_fallthru
      _
    %566 = vsyncpa [#allocation3], 1

</llo_original>
